<compile_context>
chip_gen: v6e
topology: v6e:2x2x1
jax: 0.10.0
libtpu: 0.0.40
codegen_flags: <defaults>
</compile_context>

<pallas_src>
import functools

import jax
import jax.numpy as jnp
from jax.experimental import pallas as pl
from jax.experimental.pallas import tpu as pltpu


def _round_up(x, m):
    return (x + m - 1) // m * m


def _cdiv(a, b):
    return -(-a // b)


def _model_kernel(x_ref, w_ref, b_ref, out_ref, emb_ref, acc_ref, *,
                  inv_hw, n_chunks):
    # x_ref:   [tB, C, tHW]   input tile (spatial axis on lanes)
    # w_ref:   [C, D_pad]     linear head weight (resident across grid)
    # b_ref:   [1, D_pad]     linear head bias (resident across grid)
    # out_ref: [tB, D_pad]    logits        (written at last spatial block)
    # emb_ref: [tB, C]        embeddings    (written at last spatial block)
    # acc_ref: [tB, C] f32    running spatial-sum accumulator (VMEM scratch)
    j = pl.program_id(1)

    @pl.when(j == 0)
    def _init():
        acc_ref[...] = jnp.zeros_like(acc_ref)

    # VALU-friendly reduction: accumulate 128-lane chunks with elementwise adds
    # (statically unrolled, n_chunks <= 16 by construction), then one cross-lane
    # (XLU) reduce.  Chunked ref loads keep vreg pressure bounded and avoid
    # materializing a full-tile f32 upcast when the input is bf16.
    partial = x_ref[:, :, pl.ds(0, 128)].astype(jnp.float32)
    for k in range(1, n_chunks):
        partial = partial + x_ref[:, :, pl.ds(k * 128, 128)].astype(jnp.float32)
    acc_ref[...] += jnp.sum(partial, axis=-1)

    @pl.when(j == pl.num_programs(1) - 1)
    def _finalize():
        emb = acc_ref[...] * inv_hw                        # [tB, C] f32 (GAP)
        emb_ref[...] = emb.astype(emb_ref.dtype)
        w = w_ref[...].astype(jnp.float32)                 # [C, D_pad]
        b = b_ref[...].astype(jnp.float32)                 # [1, D_pad]
        logits = jnp.dot(emb, w, preferred_element_type=jnp.float32) + b
        out_ref[...] = logits.astype(out_ref.dtype)


def abstract_model_forward(x, weight, bias, *, x_buffer_budget=4 << 20):
    """x: [B, C, H, W] (NCHW), weight: [C, D], bias: [D].

    Returns (logits [B, D], embeddings [B, C]).
    """
    B, C, H, W = x.shape
    Cw, D = weight.shape
    assert Cw == C, "weight first dim must match channel count"
    HW = H * W
    itemsize = jnp.dtype(x.dtype).itemsize

    # ---- wrapper-side padding / tiling decisions ---------------------------
    D_pad = _round_up(D, 128)            # lane-dense logits (unmasked vst)
    HW_pad0 = _round_up(HW, 128)         # spatial axis streams on lanes

    # Spatial tile: <= 2048 lanes (keeps the unrolled chunk loop short), sized
    # toward the per-buffer budget, and chosen so the padded spatial extent
    # divides evenly with minimal zero padding.
    tB0 = min(B, 8)
    thw_cap = x_buffer_budget // max(1, tB0 * C * itemsize)
    thw_cap = max(128, min(2048, (thw_cap // 128) * 128))
    n_j = _cdiv(HW_pad0, thw_cap)
    tHW = _round_up(_cdiv(HW_pad0, n_j), 128)
    HW_pad = n_j * tHW

    # Batch tile: multiple of 8 (sublane-aligned output stores), grown to fill
    # the budget so per-grid-step overhead is amortized for small-C inputs.
    if B <= 8:
        tB, B_pad = B, B
    else:
        B_pad0 = _round_up(B, 8)
        tb_cap = x_buffer_budget // max(1, C * tHW * itemsize)
        tb_cap = max(8, min(256, (tb_cap // 8) * 8, B_pad0))
        n_i = _cdiv(B_pad0, tb_cap)
        tB = _round_up(_cdiv(B_pad0, n_i), 8)
        B_pad = n_i * tB

    x_flat = x.reshape(B, C, HW)
    if B_pad != B or HW_pad != HW:
        x_flat = jnp.pad(x_flat, ((0, B_pad - B), (0, 0), (0, HW_pad - HW)))
    w_p = jnp.pad(weight, ((0, 0), (0, D_pad - D))) if D_pad != D else weight
    b_p = jnp.pad(bias, (0, D_pad - D)) if D_pad != D else bias
    b2d = b_p.reshape(1, D_pad)

    grid = (B_pad // tB, HW_pad // tHW)
    kernel = functools.partial(
        _model_kernel, inv_hw=1.0 / HW, n_chunks=tHW // 128)

    out_shapes = (
        jax.ShapeDtypeStruct((B_pad, D_pad), jnp.float32),
        jax.ShapeDtypeStruct((B_pad, C), jnp.float32),
    )

    logits_p, emb_p = pl.pallas_call(
        kernel,
        out_shape=out_shapes,
        grid_spec=pltpu.PrefetchScalarGridSpec(
            num_scalar_prefetch=0,
            grid=grid,
            in_specs=[
                # x tiled over (batch, spatial); spatial is the reduction axis.
                pl.BlockSpec((tB, C, tHW), lambda i, j: (i, 0, j)),
                # weight / bias: same block every step -> fetched once, resident.
                pl.BlockSpec((C, D_pad), lambda i, j: (0, 0)),
                pl.BlockSpec((1, D_pad), lambda i, j: (0, 0)),
            ],
            out_specs=[
                # Same output block across the spatial axis (accumulator style).
                pl.BlockSpec((tB, D_pad), lambda i, j: (i, 0)),
                pl.BlockSpec((tB, C), lambda i, j: (i, 0)),
            ],
            scratch_shapes=[pltpu.VMEM((tB, C), jnp.float32)],
        ),
        compiler_params=pltpu.CompilerParams(
            # batch axis shards across TensorCores on v7x; spatial reduction
            # axis must stay sequential ("arbitrary", last).
            dimension_semantics=("parallel", "arbitrary"),
            vmem_limit_bytes=32 * 1024 * 1024,
        ),
    )(x_flat, w_p, b2d)

    # Strip wrapper padding.
    return logits_p[:B, :D], emb_p[:B, :C]


if __name__ == "__main__":
    key = jax.random.PRNGKey(0)
    B, C, H, W = 2, 4, 16, 16
    output_dim = 10

    kx, kw, kb = jax.random.split(key, 3)
    x = jax.random.normal(kx, (B, C, H, W), dtype=jnp.float32)
    # deterministic parameter init (linear head: [C, output_dim])
    weight = jax.random.normal(kw, (C, output_dim), dtype=jnp.float32) * 0.1
    bias = jax.random.normal(kb, (output_dim,), dtype=jnp.float32) * 0.01

    logits, emb = abstract_model_forward(x, weight, bias)
    jax.block_until_ready((logits, emb))

    # reference check in plain JAX
    emb_ref = jnp.mean(x, axis=(2, 3))
    logits_ref = emb_ref @ weight + bias
    assert jnp.allclose(emb, emb_ref, atol=1e-5), "embeddings mismatch"
    assert jnp.allclose(logits, logits_ref, atol=1e-5), "forward mismatch"

    print("KERNEL_OK")
</pallas_src>

<mosaic_0001>
module attributes {stable_mosaic.version = 11 : i64} {
  func.func @_model_kernel(%arg0: i32, %arg1: i32, %arg2: memref<2x4x256xf32, #tpu.memory_space<vmem>>, %arg3: memref<4x128xf32, #tpu.memory_space<vmem>>, %arg4: memref<1x128xf32, #tpu.memory_space<vmem>>, %arg5: memref<2x128xf32, #tpu.memory_space<vmem>>, %arg6: memref<2x4xf32, #tpu.memory_space<vmem>>, %arg7: memref<2x4xf32, #tpu.memory_space<vmem>>) attributes {dimension_semantics = [#tpu.dimension_semantics<parallel>, #tpu.dimension_semantics<arbitrary>], iteration_bounds = array<i64: 1, 1>, scalar_prefetch = 0 : i64, scratch_operands = 1 : i64, tpu.core_type = #tpu.core_type<tc>, window_params = [{transform_indices = @transform_0, window_bounds = array<i64: 2, 4, 256>}, {pipeline_mode = #tpu.pipeline_mode<synchronous>, transform_indices = @transform_1, window_bounds = array<i64: 4, 128>}, {pipeline_mode = #tpu.pipeline_mode<synchronous>, transform_indices = @transform_2, window_bounds = array<i64: 1, 128>}, {transform_indices = @transform_3, window_bounds = array<i64: 2, 128>}, {transform_indices = @transform_4, window_bounds = array<i64: 2, 4>}]} {
    %c0_i32 = arith.constant 0 : i32
    %0 = arith.cmpi eq, %arg1, %c0_i32 : i32
    %1 = arith.extui %0 : i1 to i32
    %c0_i32_0 = arith.constant 0 : i32
    %2 = arith.cmpi ne, %1, %c0_i32_0 : i32
    scf.if %2 {
      %cst_11 = arith.constant 0.000000e+00 : f32
      %13 = vector.broadcast %cst_11 : f32 to vector<2x4xf32>
      %c0_12 = arith.constant 0 : index
      %c0_13 = arith.constant 0 : index
      %14 = vector.load %arg7[%c0_12, %c0_13] : memref<2x4xf32, #tpu.memory_space<vmem>>, vector<2x4xf32>
      tpu.vector_store %arg7[%c0_12, %c0_13], %13 {strides = array<i32>} : memref<2x4xf32, #tpu.memory_space<vmem>>, vector<2x4xf32>,
    } else {
    }
    %c0 = arith.constant 0 : index
    %c0_1 = arith.constant 0 : index
    %c0_2 = arith.constant 0 : index
    %3 = vector.load %arg2[%c0, %c0_1, %c0_2] : memref<2x4x256xf32, #tpu.memory_space<vmem>>, vector<2x4x128xf32>
    %c0_3 = arith.constant 0 : index
    %c0_4 = arith.constant 0 : index
    %c128 = arith.constant 128 : index
    %4 = vector.load %arg2[%c0_3, %c0_4, %c128] : memref<2x4x256xf32, #tpu.memory_space<vmem>>, vector<2x4x128xf32>
    %5 = arith.addf %3, %4 : vector<2x4x128xf32>
    %c0_5 = arith.constant 0 : index
    %c0_6 = arith.constant 0 : index
    %6 = vector.load %arg7[%c0_5, %c0_6] : memref<2x4xf32, #tpu.memory_space<vmem>>, vector<2x4xf32>
    %cst = arith.constant dense<0.000000e+00> : vector<2x4xf32>
    %7 = vector.multi_reduction <add>, %5, %cst [2] : vector<2x4x128xf32> to vector<2x4xf32>
    %8 = arith.addf %6, %7 : vector<2x4xf32>
    %c0_7 = arith.constant 0 : index
    %c0_8 = arith.constant 0 : index
    %9 = vector.load %arg7[%c0_7, %c0_8] : memref<2x4xf32, #tpu.memory_space<vmem>>, vector<2x4xf32>
    tpu.vector_store %arg7[%c0_7, %c0_8], %8 {strides = array<i32>} : memref<2x4xf32, #tpu.memory_space<vmem>>, vector<2x4xf32>,
    %c0_i32_9 = arith.constant 0 : i32
    %10 = arith.cmpi eq, %arg1, %c0_i32_9 : i32
    %11 = arith.extui %10 : i1 to i32
    %c0_i32_10 = arith.constant 0 : i32
    %12 = arith.cmpi ne, %11, %c0_i32_10 : i32
    scf.if %12 {
      %c0_11 = arith.constant 0 : index
      %c0_12 = arith.constant 0 : index
      %13 = vector.load %arg7[%c0_11, %c0_12] : memref<2x4xf32, #tpu.memory_space<vmem>>, vector<2x4xf32>
      %cst_13 = arith.constant 3.906250e-03 : f32
      %14 = vector.broadcast %cst_13 : f32 to vector<2x4xf32>
      %15 = arith.mulf %13, %14 : vector<2x4xf32>
      %c0_14 = arith.constant 0 : index
      %c0_15 = arith.constant 0 : index
      %16 = vector.load %arg6[%c0_14, %c0_15] : memref<2x4xf32, #tpu.memory_space<vmem>>, vector<2x4xf32>
      tpu.vector_store %arg6[%c0_14, %c0_15], %15 {strides = array<i32>} : memref<2x4xf32, #tpu.memory_space<vmem>>, vector<2x4xf32>,
      %c0_16 = arith.constant 0 : index
      %c0_17 = arith.constant 0 : index
      %17 = vector.load %arg3[%c0_16, %c0_17] : memref<4x128xf32, #tpu.memory_space<vmem>>, vector<4x128xf32>
      %c0_18 = arith.constant 0 : index
      %c0_19 = arith.constant 0 : index
      %18 = vector.load %arg4[%c0_18, %c0_19] : memref<1x128xf32, #tpu.memory_space<vmem>>, vector<1x128xf32>
      %cst_20 = arith.constant dense<0.000000e+00> : vector<2x128xf32>
      %19 = tpu.matmul %15, %17, %cst_20 {dimension_numbers = #tpu.dot_dimension_numbers<[1], [0], [0], [1], [0, 0, 1, 1], [], []>} : vector<2x4xf32>, vector<4x128xf32>, vector<2x128xf32> -> vector<2x128xf32>
      %20 = vector.broadcast %18 : vector<1x128xf32> to vector<2x128xf32>
      %21 = arith.addf %19, %20 : vector<2x128xf32>
      %c0_21 = arith.constant 0 : index
      %c0_22 = arith.constant 0 : index
      %22 = vector.load %arg5[%c0_21, %c0_22] : memref<2x128xf32, #tpu.memory_space<vmem>>, vector<2x128xf32>
      tpu.vector_store %arg5[%c0_21, %c0_22], %21 {strides = array<i32>} : memref<2x128xf32, #tpu.memory_space<vmem>>, vector<2x128xf32>,
    } else {
    }
    return
  }
  func.func @transform_0(%arg0: i32, %arg1: i32) -> (i32, i32, i32) {
    %c0_i32 = arith.constant 0 : i32
    %c0_i32_0 = arith.constant 0 : i32
    return %arg0, %c0_i32, %arg1 : i32, i32, i32
  }
  func.func @transform_1(%arg0: i32, %arg1: i32) -> (i32, i32) {
    %c0_i32 = arith.constant 0 : i32
    %c0_i32_0 = arith.constant 0 : i32
    %c0_i32_1 = arith.constant 0 : i32
    return %c0_i32, %c0_i32_0 : i32, i32
  }
  func.func @transform_2(%arg0: i32, %arg1: i32) -> (i32, i32) {
    %c0_i32 = arith.constant 0 : i32
    %c0_i32_0 = arith.constant 0 : i32
    %c0_i32_1 = arith.constant 0 : i32
    return %c0_i32, %c0_i32_0 : i32, i32
  }
  func.func @transform_3(%arg0: i32, %arg1: i32) -> (i32, i32) {
    %c0_i32 = arith.constant 0 : i32
    %c0_i32_0 = arith.constant 0 : i32
    return %arg0, %c0_i32 : i32, i32
  }
  func.func @transform_4(%arg0: i32, %arg1: i32) -> (i32, i32) {
    %c0_i32 = arith.constant 0 : i32
    %c0_i32_0 = arith.constant 0 : i32
    return %arg0, %c0_i32 : i32, i32
  }
}

</mosaic_0001>

<llo_original>
// kernel: tpu_custom_call.1
$region0: #{tpu_custom_call.1}
  #allocation0 [shape = 'u32[]', space=smem, size = 0x4, offset = 0x4, fixed_abs, tag = 'smem constant byte address 0x4 - core index']
  #allocation1 [shape = 'u32[144,128]{1,0:T(1,128)}', space=vmem, size = 0x12000, scoped, tag = 'internal scratch']
  #allocation2 [shape = 'f32[2,4]{1,0:T(2,128)}', space=vmem, size = 0x400, scoped, tag = 'scratch operand']
  %s0 = inlined_call_operand.hbm [shape: f32[2,4,256], index: 0, kind: input, shape index: {}]
  %s1 = inlined_call_operand.hbm [shape: f32[4,128], index: 1, kind: input, shape index: {}]
  %s2 = inlined_call_operand.vmem [shape: f32[1,128], index: 2, kind: input, shape index: {}]
  %s3 = inlined_call_operand.hbm [shape: f32[2,128], index: 3, kind: output, shape index: {0}]
  %s4 = inlined_call_operand.hbm [shape: f32[2,4], index: 4, kind: output, shape index: {1}]
  %5 = xla_tuple %s3, %s4
  %s6 = sld [smem:[#allocation0]]
  $region46: #{tpu_custom_call.1} parent=0
    _
  %s8 = ssub.s32 1, %s6
  %s9 = scalar_select 0, %s8, %s6
  $region1: #{tpu_custom_call.1} parent=0
    #allocation3 [shape = 'u8[8192]{0}', space=vmem, size = 0x2000, scoped, tag = 'input window, operand 0, single buffered']
    #allocation4 [shape = 's32[1]{0}', space=sflag, size = 0x4, scoped, tag = 'scoped memory for tpu_custom_call.1']
    #allocation5 [shape = 's32[1]{0}', space=sflag, size = 0x4, scoped, tag = 'scoped memory for tpu_custom_call.1']
    #allocation6 [shape = 'u8[2048]{0}', space=vmem, size = 0x800, scoped, tag = 'input window, operand 1, single buffered']
    #allocation7 [shape = 's32[1]{0}', space=sflag, size = 0x4, scoped, tag = 'scoped memory for tpu_custom_call.1']
    #allocation8 [shape = 'u8[1024]{0}', space=vmem, size = 0x400, scoped, tag = 'output window, operand 0, single buffered']
    #allocation9 [shape = 'u8[1024]{0}', space=vmem, size = 0x400, scoped, tag = 'output window, operand 1, single buffered']
    #allocation10 [shape = 's32[1]{0}', space=sflag, size = 0x4, scoped, tag = 'scoped memory for tpu_custom_call.1']
    %10 = vsyncpa [#allocation4], 0
    %11 = vsyncpa [#allocation7], 0
    %12 = vsyncpa [#allocation5], 0
    %13 = vsyncpa [#allocation10], 0
    // Predicated region
    $region2: #{tpu_custom_call.1} parent=1 // pred_check
      _
    $region3: #{tpu_custom_call.1} parent=1 // pred_check_branch
      %15 = sbr.rel (0) target = $region5
    $region4: #{tpu_custom_call.1} parent=1 // pred_region
      %s17 = ssub.s32 256, 256
      %18 = vsyncadd [#allocation4], %s17
      %s19 = sshll.u32 [#allocation3], 4
      %s20 = int_to_ptr.vmem [resolvable:$true] %s19
      %25 = dma.hbm_to_vmem [thread:$0]  %s0, 256, %s20, [#allocation4], 128, 128, 8
    $region5: #{tpu_custom_call.1} parent=1 // pred_fallthru
      _
    // Predicated region
    $region6: #{tpu_custom_call.1} parent=1 // pred_check
      _
    $region7: #{tpu_custom_call.1} parent=1 // pred_check_branch
      %27 = sbr.rel (0) target = $region9
    $region8: #{tpu_custom_call.1} parent=1 // pred_region
      %s29 = ssub.s32 64, 64
      %30 = vsyncadd [#allocation7], %s29
      %s32 = sshll.u32 [#allocation6], 4
      %s33 = int_to_ptr.vmem [resolvable:$true] %s32
      %35 = dma.hbm_to_vmem [thread:$0]  %s1, 64, %s33, [#allocation7]
    $region9: #{tpu_custom_call.1} parent=1 // pred_fallthru
      _
    // Predicated region
    $region10: #{tpu_custom_call.1} parent=1 // pred_check
      _
    $region11: #{tpu_custom_call.1} parent=1 // pred_check_branch
      %37 = sbr.rel (0) target = $region13
    $region12: #{tpu_custom_call.1} parent=1 // pred_region
      _
    $region13: #{tpu_custom_call.1} parent=1 // pred_fallthru
      _
    // Predicated region
    $region14: #{tpu_custom_call.1} parent=1 // pred_check
      _
    $region15: #{tpu_custom_call.1} parent=1 // pred_check_branch
      %39 = sbr.rel (0) target = $region17
    $region16: #{tpu_custom_call.1} parent=1 // pred_region
      %40 = dma.done [#allocation4], 256
    $region17: #{tpu_custom_call.1} parent=1 // pred_fallthru
      _
    // Predicated region
    $region18: #{tpu_custom_call.1} parent=1 // pred_check
      _
    $region19: #{tpu_custom_call.1} parent=1 // pred_check_branch
      %42 = sbr.rel (0) target = $region21
    $region20: #{tpu_custom_call.1} parent=1 // pred_region
      %43 = dma.done [#allocation7], 64
    $region21: #{tpu_custom_call.1} parent=1 // pred_fallthru
      _
    %p44 = scmp.eq.s32.totalorder 0, 0
    // Predicated region
    $region22: #{tpu_custom_call.1} parent=1 // pred_check
      %p45 = pneg %p44
    $region23: #{tpu_custom_call.1} parent=1 // pred_check_branch
      %47 = sbr.rel (%p45) target = $region25
    $region24: #{tpu_custom_call.1} parent=1 // pred_region
      %vm48 = vcmask 25600
      %49 = vst.msk [vmem:[#allocation2] sm:$0x3] %vm48, 0.0
    $region25: #{tpu_custom_call.1} parent=1 // pred_fallthru
      _
    %v50 = vld [vmem:[#allocation3] sm:$0xf]
    %v51 = vld [vmem:[#allocation3 + $0x8] sm:$0xf]
    %v52 = vld [vmem:[#allocation3 + $0x4] sm:$0xf]
    %v53 = vld [vmem:[#allocation3 + $0xc] sm:$0xf]
    %v54 = vadd.f32 %v50, %v52
    %v55 = vadd.f32 %v51, %v53
    %v56 = vld [vmem:[#allocation2] sm:$0x3]
    %vm57 = vcmask 1043456
    %v58 = vsel %vm57, %v54, 0.0
    %59 = vadd.xlane.f32.xlu0 %v58
    %v60 = vpop.xlane.xlu0 %59
    %v61 = vsel %vm57, %v55, 0.0
    %62 = vadd.xlane.f32.xlu0 %v61
    %v63 = vpop.xlane.xlu0 %62
    %v66 = vlaneseq
    %v67 = vand.u32 %v66, 127
    %v68 = vlaneseq
    %v69 = vshrl.u32 %v68, 7
    %v70 = vsub.s32 %v67, %v69
    %v71 = vrot.slane %v60, %v70
    %v72 = vlaneseq
    %v73 = vshrl.u32 %v72, 7
    %v74 = vsub.s32 %v67, %v73
    %v75 = vrot.slane %v63, %v74
    %vm76 = vcmask 1041409
    %v77 = vsel %vm76, %v75, %v71
    %v79 = vadd.f32 %v56, %v77
    %vm80 = vcmask 25600
    %81 = vst.msk [vmem:[#allocation2] sm:$0x3] %vm80, %v79
    // Predicated region
    $region26: #{tpu_custom_call.1} parent=1 // pred_check
      %p82 = pneg %p44
    $region27: #{tpu_custom_call.1} parent=1 // pred_check_branch
      %84 = sbr.rel (%p82) target = $region29
    $region28: #{tpu_custom_call.1} parent=1 // pred_region
      %v85 = vld [vmem:[#allocation2] sm:$0x3]
      %v86 = vmul.f32 %v85, 0.00390625
      %87 = vst.msk [vmem:[#allocation9] sm:$0x3] %vm80, %v86
      %v88 = vld [vmem:[#allocation6] sm:$0xf]
      %v89 = vld [vmem:[%s2] sm:$0x1]
      %v91 = vlaneseq
      %v92 = vshrl.u32 %v91, 7
      %v93 = vsub.s32 0, %v92
      %v94 = vrot.slane %v89, %v93
      %vm96 = vcmask 31744
      %v98 = vsel %vm96, %v86, 0
      %v101 = vsel %vm57, %v88, 0
      %103 = vmatprep.subr.mxu0 0.0
      %104 = vmatpush1.msra.mxu0 0.0
      %105 = vmatprep.subr.mxu0 0.0
      %106 = vmatpush1.msra.mxu0 0.0
      %107 = vmatprep.subr.mxu0 0.0
      %108 = vmatpush1.msra.mxu0 0.0
      %109 = vmatprep.subr.mxu0 0.0
      %110 = vmatpush1.msra.mxu0 0.0
      %111 = vmatprep.subr.mxu0 0.0
      %112 = vmatpush1.msra.mxu0 0.0
      %113 = vmatprep.subr.mxu0 0.0
      %114 = vmatpush1.msra.mxu0 0.0
      %115 = vmatprep.subr.mxu0 0.0
      %116 = vmatpush1.msra.mxu0 0.0
      %117 = vmatprep.subr.mxu0 0.0
      %118 = vmatpush1.msra.mxu0 0.0
      %119 = vmatprep.subr.mxu0 0.0
      %120 = vmatpush1.msra.mxu0 0.0
      %121 = vmatprep.subr.mxu0 0.0
      %122 = vmatpush1.msra.mxu0 0.0
      %123 = vmatprep.subr.mxu0 0.0
      %124 = vmatpush1.msra.mxu0 0.0
      %125 = vmatprep.subr.mxu0 0.0
      %126 = vmatpush1.msra.mxu0 0.0
      %127 = vmatprep.subr.mxu0 0.0
      %128 = vmatpush1.msra.mxu0 0.0
      %129 = vmatprep.subr.mxu0 0.0
      %130 = vmatpush1.msra.mxu0 0.0
      %131 = vmatprep.subr.mxu0 0.0
      %132 = vmatpush1.msra.mxu0 0.0
      %133 = vmatprep.subr.mxu0 0.0
      %134 = vmatpush1.msra.mxu0 %v101
      %135 = vmatprep.subr.mxu0 0.0
      %136 = vmatpush2.msra.mxu0 0.0
      %137 = vmatprep.subr.mxu0 0.0
      %138 = vmatpush2.msra.mxu0 0.0
      %139 = vmatprep.subr.mxu0 0.0
      %140 = vmatpush2.msra.mxu0 0.0
      %141 = vmatprep.subr.mxu0 0.0
      %142 = vmatpush2.msra.mxu0 0.0
      %143 = vmatprep.subr.mxu0 0.0
      %144 = vmatpush2.msra.mxu0 0.0
      %145 = vmatprep.subr.mxu0 0.0
      %146 = vmatpush2.msra.mxu0 0.0
      %147 = vmatprep.subr.mxu0 0.0
      %148 = vmatpush2.msra.mxu0 0.0
      %149 = vmatprep.subr.mxu0 0.0
      %150 = vmatpush2.msra.mxu0 0.0
      %151 = vmatprep.subr.mxu0 0.0
      %152 = vmatpush2.msra.mxu0 0.0
      %153 = vmatprep.subr.mxu0 0.0
      %154 = vmatpush2.msra.mxu0 0.0
      %155 = vmatprep.subr.mxu0 0.0
      %156 = vmatpush2.msra.mxu0 0.0
      %157 = vmatprep.subr.mxu0 0.0
      %158 = vmatpush2.msra.mxu0 0.0
      %159 = vmatprep.subr.mxu0 0.0
      %160 = vmatpush2.msra.mxu0 0.0
      %161 = vmatprep.subr.mxu0 0.0
      %162 = vmatpush2.msra.mxu0 0.0
      %163 = vmatprep.subr.mxu0 0.0
      %164 = vmatpush2.msra.mxu0 0.0
      %165 = vmatprep.subr.mxu0 0.0
      %166 = vmatpush2.msra.mxu0 0.0
      %167 = vmatprep.mubr.f32.mxu0 0.0
      %168 = vmatmul.mubr.f32.gmra.mxu0 %v98
      %v169 = vpop.f32.mrf.mxu0
      %v170 = vadd.f32 %v94, %v169
      %v171 = vpop.f32.mrf.mxu0
      %172 = vdwg.mxu0
      %173 = vst [vmem:[#allocation8] sm:$0x3] %v170
    $region29: #{tpu_custom_call.1} parent=1 // pred_fallthru
      _
    // Predicated region
    $region30: #{tpu_custom_call.1} parent=1 // pred_check
      _
    $region31: #{tpu_custom_call.1} parent=1 // pred_check_branch
      %175 = sbr.rel (0) target = $region33
    $region32: #{tpu_custom_call.1} parent=1 // pred_region
      %s177 = ssub.s32 32, 32
      %178 = vsyncadd [#allocation5], %s177
      %s180 = sshll.u32 [#allocation8], 4
      %s181 = int_to_ptr.vmem [resolvable:$true] %s180
      %183 = dma.vmem_to_hbm [thread:$0]  %s181, 32, %s3, [#allocation5]
    $region33: #{tpu_custom_call.1} parent=1 // pred_fallthru
      _
    // Predicated region
    $region34: #{tpu_custom_call.1} parent=1 // pred_check
      _
    $region35: #{tpu_custom_call.1} parent=1 // pred_check_branch
      %185 = sbr.rel (0) target = $region37
    $region36: #{tpu_custom_call.1} parent=1 // pred_region
      %s187 = ssub.s32 32, 32
      %188 = vsyncadd [#allocation10], %s187
      %s190 = sshll.u32 [#allocation9], 4
      %s191 = int_to_ptr.vmem [resolvable:$true] %s190
      %193 = dma.vmem_to_hbm [thread:$0]  %s191, 32, %s4, [#allocation10]
    $region37: #{tpu_custom_call.1} parent=1 // pred_fallthru
      _
    // Predicated region
    $region38: #{tpu_custom_call.1} parent=1 // pred_check
      _
    $region39: #{tpu_custom_call.1} parent=1 // pred_check_branch
      %195 = sbr.rel (0) target = $region41
    $region40: #{tpu_custom_call.1} parent=1 // pred_region
      %196 = dma.done [#allocation5], 32
    $region41: #{tpu_custom_call.1} parent=1 // pred_fallthru
      _
    // Predicated region
    $region42: #{tpu_custom_call.1} parent=1 // pred_check
      _
    $region43: #{tpu_custom_call.1} parent=1 // pred_check_branch
      %198 = sbr.rel (0) target = $region45
    $region44: #{tpu_custom_call.1} parent=1 // pred_region
      %199 = dma.done [#allocation10], 32
    $region45: #{tpu_custom_call.1} parent=1 // pred_fallthru
      _
    %200 = vsyncpa [#allocation4], 1
    %201 = vsyncpa [#allocation7], 1
    %202 = vsyncpa [#allocation5], 1
    %203 = vsyncpa [#allocation10], 1

</llo_original>
